<compile_context>
chip_gen: v7x
topology: tpu7x:2x2x1
jax: 0.10.0
libtpu: 0.0.40
codegen_flags: <defaults>
</compile_context>

<pallas_src>
import jax
import jax.numpy as jnp
from jax.experimental import pallas as pl
from jax.experimental.pallas import tpu as pltpu

SUBLANE = 16  # bf16 sublane packing: batch tile kept a multiple of this


def _round_up(n: int, m: int) -> int:
    return ((n + m - 1) // m) * m


def mlp_kernel(x_ref, w1_ref, b1_ref, w2_ref, b2_ref, w3_ref, b3_ref, o_ref):
    # f32 -> bf16 cast of the activation tile happens here (VPU, hidden under
    # the MXU); matmuls accumulate in f32 via preferred_element_type; bias-add
    # and ReLU stay in f32 on the VPU, then re-quantize to bf16 for the next
    # matmul.
    x = x_ref[...].astype(jnp.bfloat16)
    h1 = jnp.dot(x, w1_ref[...], preferred_element_type=jnp.float32) + b1_ref[...]
    h1 = jnp.maximum(h1, 0.0).astype(jnp.bfloat16)
    h2 = jnp.dot(h1, w2_ref[...], preferred_element_type=jnp.float32) + b2_ref[...]
    h2 = jnp.maximum(h2, 0.0).astype(jnp.bfloat16)
    out = jnp.dot(h2, w3_ref[...], preferred_element_type=jnp.float32) + b3_ref[...]
    o_ref[...] = out.astype(o_ref.dtype)


def mlp_forward(x, params, *, batch_tile=512):
    """x: (B, input_dim) f32.  params: transposed (in, out) weights, (1, out) biases."""
    B, d_in = x.shape
    w1, b1 = params["w1"], params["b1"]
    w2, b2 = params["w2"], params["b2"]
    w3, b3 = params["w3"], params["b3"]
    d1, d2, d_out = w1.shape[1], w2.shape[1], w3.shape[1]
    assert w1.shape[0] == d_in and w2.shape[0] == d1 and w3.shape[0] == d2

    # One-time bf16 conversion of the (tiny) weight matrices for the MXU.
    # Biases stay f32 for the VPU bias-add.
    w1b = w1.astype(jnp.bfloat16)
    w2b = w2.astype(jnp.bfloat16)
    w3b = w3.astype(jnp.bfloat16)
    b1f = b1.astype(jnp.float32)
    b2f = b2.astype(jnp.float32)
    b3f = b3.astype(jnp.float32)

    # Batch tile: at most `batch_tile`, a multiple of the sublane packing, and
    # small enough that the grid gets ~4 steps when B allows it (keeps the DMA
    # pipeline busy on all chips, lets v7x shard the batch over both TCs).
    tb = max(SUBLANE, min(batch_tile, _round_up(pl.cdiv(B, 4), SUBLANE)))
    grid = (pl.cdiv(B, tb),)

    # --- VMEM feasibility / budget ---------------------------------------
    # Single-buffered bf16 weights + f32 biases, double-buffered x/out tiles,
    # plus an upper bound on the f32 intermediates the compiler materializes.
    weight_bytes = 2 * (w1b.size + w2b.size + w3b.size) + 4 * (b1f.size + b2f.size + b3f.size)
    tile_bytes = 2 * (tb * d_in * 4 + tb * d_out * 4)
    scratch_bytes = tb * (d_in + d1 + d2 + d_out) * 4
    vmem_need = weight_bytes + tile_bytes + scratch_bytes
    if vmem_need > 48 * 1024 * 1024:
        # TODO(synk): for hidden dims where the fully-resident weights blow the
        # v7x 64 MiB per-TC VMEM budget, tile the contraction (inner
        # pltpu.emit_pipeline over K) instead of keeping all weights resident.
        raise NotImplementedError(
            f"resident weights + tiles need ~{vmem_need / 2**20:.1f} MiB VMEM; "
            "K-tiled fallback not implemented")
    # Cap at 56 MiB so the same budget is safe on v7x (64 MiB/TC); v5e/v6e
    # (128 MiB physical) can raise this if tiles / hidden dims grow.
    vmem_limit = int(min(max(4 * vmem_need, 32 * 1024 * 1024), 56 * 1024 * 1024))

    def resident(arr):
        # Full-array block with a constant index map: DMA'd once, never
        # revisited.  Buffered(1) keeps a single VMEM copy instead of the
        # default double buffer (headroom for v7x's 64 MiB VMEM).
        return pl.BlockSpec(arr.shape, lambda i: (0, 0),
                            pipeline_mode=pl.Buffered(buffer_count=1))

    flops = 2 * B * (d_in * d1 + d1 * d2 + d2 * d_out)
    bytes_accessed = (x.size * x.dtype.itemsize + B * d_out * 4
                      + 2 * (w1b.size + w2b.size + w3b.size)
                      + 4 * (b1f.size + b2f.size + b3f.size))

    return pl.pallas_call(
        mlp_kernel,
        out_shape=jax.ShapeDtypeStruct((B, d_out), jnp.float32),
        grid=grid,
        in_specs=[
            pl.BlockSpec((tb, d_in), lambda i: (i, 0)),   # x tile (pipelined, ragged-safe)
            resident(w1b), resident(b1f),
            resident(w2b), resident(b2f),
            resident(w3b), resident(b3f),
        ],
        out_specs=pl.BlockSpec((tb, d_out), lambda i: (i, 0)),
        compiler_params=pltpu.CompilerParams(
            dimension_semantics=("parallel",),            # megacore-shard batch on v7x
            vmem_limit_bytes=vmem_limit,
        ),
        cost_estimate=pl.CostEstimate(
            flops=flops, transcendentals=0, bytes_accessed=bytes_accessed),
    )(x, w1b, b1f, w2b, b2f, w3b, b3f)


def init_params(key, input_dim, output_dim, layer1_dim=64, layer2_dim=128):
    """Deterministic init mimicking nn.Linear's uniform(-1/sqrt(fan_in), +1/sqrt(fan_in)).
    Weights are stored as (in, out), i.e. transposed relative to PyTorch."""
    ks = jax.random.split(key, 6)

    def linear(kw, kb, fan_in, fan_out):
        bound = 1.0 / jnp.sqrt(fan_in)
        w = jax.random.uniform(kw, (fan_in, fan_out), jnp.float32, -bound, bound)
        b = jax.random.uniform(kb, (1, fan_out), jnp.float32, -bound, bound)
        return w, b

    w1, b1 = linear(ks[0], ks[1], input_dim, layer1_dim)
    w2, b2 = linear(ks[2], ks[3], layer1_dim, layer2_dim)
    w3, b3 = linear(ks[4], ks[5], layer2_dim, output_dim)
    return {"w1": w1, "b1": b1, "w2": w2, "b2": b2, "w3": w3, "b3": b3}


def mlp_reference(x, p):
    """Pure-JAX reference mirroring the kernel's bf16-operand / f32-accumulate path."""
    def mm(a, w):
        return jnp.dot(a.astype(jnp.bfloat16), w.astype(jnp.bfloat16),
                       preferred_element_type=jnp.float32)
    h1 = jnp.maximum(mm(x, p["w1"]) + p["b1"], 0.0)
    h2 = jnp.maximum(mm(h1, p["w2"]) + p["b2"], 0.0)
    return mm(h2, p["w3"]) + p["b3"]


if __name__ == "__main__":
    key = jax.random.PRNGKey(0)
    k_param, k_x1, k_x2 = jax.random.split(key, 3)

    input_dim, output_dim = 32, 16
    params = init_params(k_param, input_dim, output_dim)

    # Small batch -> single grid step, narrow (16-lane) output block, unpadded x.
    x_small = jax.random.normal(k_x1, (8, input_dim), jnp.float32)
    out_small = jax.block_until_ready(mlp_forward(x_small, params))
    ref_small = mlp_reference(x_small, params)
    assert out_small.shape == (8, output_dim)
    assert jnp.allclose(out_small, ref_small, atol=2e-2, rtol=2e-2)

    # Ragged batch (200 rows, tile 64) -> 4-step pipelined grid with a partial
    # last tile handled by the Pallas pipeline (no wrapper padding).
    x_big = jax.random.normal(k_x2, (200, input_dim), jnp.float32)
    out_big = jax.block_until_ready(mlp_forward(x_big, params))
    ref_big = mlp_reference(x_big, params)
    assert out_big.shape == (200, output_dim)
    assert jnp.allclose(out_big, ref_big, atol=2e-2, rtol=2e-2)

    print("KERNEL_OK")
</pallas_src>

<mosaic_0001>
module attributes {stable_mosaic.version = 11 : i64} {
  func.func @mlp_kernel(%arg0: i32, %arg1: memref<16x32xf32, #tpu.memory_space<vmem>>, %arg2: memref<32x64xbf16, #tpu.memory_space<vmem>>, %arg3: memref<1x64xf32, #tpu.memory_space<vmem>>, %arg4: memref<64x128xbf16, #tpu.memory_space<vmem>>, %arg5: memref<1x128xf32, #tpu.memory_space<vmem>>, %arg6: memref<128x16xbf16, #tpu.memory_space<vmem>>, %arg7: memref<1x16xf32, #tpu.memory_space<vmem>>, %arg8: memref<16x16xf32, #tpu.memory_space<vmem>>) attributes {dimension_semantics = [#tpu.dimension_semantics<parallel>], iteration_bounds = array<i64: 1>, scalar_prefetch = 0 : i64, scratch_operands = 0 : i64, tpu.core_type = #tpu.core_type<tc>, window_params = [{transform_indices = @transform_0, window_bounds = array<i64: 16, 32>}, {pipeline_mode = #tpu.pipeline_mode<synchronous>, transform_indices = @transform_1, window_bounds = array<i64: 32, 64>}, {pipeline_mode = #tpu.pipeline_mode<synchronous>, transform_indices = @transform_2, window_bounds = array<i64: 1, 64>}, {pipeline_mode = #tpu.pipeline_mode<synchronous>, transform_indices = @transform_3, window_bounds = array<i64: 64, 128>}, {pipeline_mode = #tpu.pipeline_mode<synchronous>, transform_indices = @transform_4, window_bounds = array<i64: 1, 128>}, {pipeline_mode = #tpu.pipeline_mode<synchronous>, transform_indices = @transform_5, window_bounds = array<i64: 128, 16>}, {pipeline_mode = #tpu.pipeline_mode<synchronous>, transform_indices = @transform_6, window_bounds = array<i64: 1, 16>}, {transform_indices = @transform_7, window_bounds = array<i64: 16, 16>}]} {
    %c0 = arith.constant 0 : index
    %c0_0 = arith.constant 0 : index
    %0 = vector.load %arg1[%c0, %c0_0] : memref<16x32xf32, #tpu.memory_space<vmem>>, vector<16x32xf32>
    %1 = arith.truncf %0 : vector<16x32xf32> to vector<16x32xbf16>
    %c0_1 = arith.constant 0 : index
    %c0_2 = arith.constant 0 : index
    %2 = vector.load %arg2[%c0_1, %c0_2] : memref<32x64xbf16, #tpu.memory_space<vmem>>, vector<32x64xbf16>
    %cst = arith.constant dense<0.000000e+00> : vector<16x64xf32>
    %3 = tpu.matmul %1, %2, %cst {dimension_numbers = #tpu.dot_dimension_numbers<[1], [0], [0], [1], [0, 0, 1, 1], [], []>} : vector<16x32xbf16>, vector<32x64xbf16>, vector<16x64xf32> -> vector<16x64xf32>
    %c0_3 = arith.constant 0 : index
    %c0_4 = arith.constant 0 : index
    %4 = vector.load %arg3[%c0_3, %c0_4] : memref<1x64xf32, #tpu.memory_space<vmem>>, vector<1x64xf32>
    %5 = vector.broadcast %4 : vector<1x64xf32> to vector<16x64xf32>
    %6 = arith.addf %3, %5 : vector<16x64xf32>
    %cst_5 = arith.constant 0.000000e+00 : f32
    %7 = vector.broadcast %cst_5 : f32 to vector<16x64xf32>
    %8 = arith.maximumf %6, %7 : vector<16x64xf32>
    %9 = arith.truncf %8 : vector<16x64xf32> to vector<16x64xbf16>
    %c0_6 = arith.constant 0 : index
    %c0_7 = arith.constant 0 : index
    %10 = vector.load %arg4[%c0_6, %c0_7] : memref<64x128xbf16, #tpu.memory_space<vmem>>, vector<64x128xbf16>
    %cst_8 = arith.constant dense<0.000000e+00> : vector<16x128xf32>
    %11 = tpu.matmul %9, %10, %cst_8 {dimension_numbers = #tpu.dot_dimension_numbers<[1], [0], [0], [1], [0, 0, 1, 1], [], []>} : vector<16x64xbf16>, vector<64x128xbf16>, vector<16x128xf32> -> vector<16x128xf32>
    %c0_9 = arith.constant 0 : index
    %c0_10 = arith.constant 0 : index
    %12 = vector.load %arg5[%c0_9, %c0_10] : memref<1x128xf32, #tpu.memory_space<vmem>>, vector<1x128xf32>
    %13 = vector.broadcast %12 : vector<1x128xf32> to vector<16x128xf32>
    %14 = arith.addf %11, %13 : vector<16x128xf32>
    %cst_11 = arith.constant 0.000000e+00 : f32
    %15 = vector.broadcast %cst_11 : f32 to vector<16x128xf32>
    %16 = arith.maximumf %14, %15 : vector<16x128xf32>
    %17 = arith.truncf %16 : vector<16x128xf32> to vector<16x128xbf16>
    %c0_12 = arith.constant 0 : index
    %c0_13 = arith.constant 0 : index
    %18 = vector.load %arg6[%c0_12, %c0_13] : memref<128x16xbf16, #tpu.memory_space<vmem>>, vector<128x16xbf16>
    %cst_14 = arith.constant dense<0.000000e+00> : vector<16x16xf32>
    %19 = tpu.matmul %17, %18, %cst_14 {dimension_numbers = #tpu.dot_dimension_numbers<[1], [0], [0], [1], [0, 0, 1, 1], [], []>} : vector<16x128xbf16>, vector<128x16xbf16>, vector<16x16xf32> -> vector<16x16xf32>
    %c0_15 = arith.constant 0 : index
    %c0_16 = arith.constant 0 : index
    %20 = vector.load %arg7[%c0_15, %c0_16] : memref<1x16xf32, #tpu.memory_space<vmem>>, vector<1x16xf32>
    %21 = vector.broadcast %20 : vector<1x16xf32> to vector<16x16xf32>
    %22 = arith.addf %19, %21 : vector<16x16xf32>
    %c0_17 = arith.constant 0 : index
    %c0_18 = arith.constant 0 : index
    %23 = vector.load %arg8[%c0_17, %c0_18] : memref<16x16xf32, #tpu.memory_space<vmem>>, vector<16x16xf32>
    tpu.vector_store %arg8[%c0_17, %c0_18], %22 {strides = array<i32>} : memref<16x16xf32, #tpu.memory_space<vmem>>, vector<16x16xf32>,
    return
  }
  func.func @transform_0(%arg0: i32) -> (i32, i32) {
    %c0_i32 = arith.constant 0 : i32
    %c0_i32_0 = arith.constant 0 : i32
    return %arg0, %c0_i32 : i32, i32
  }
  func.func @transform_1(%arg0: i32) -> (i32, i32) {
    %c0_i32 = arith.constant 0 : i32
    %c0_i32_0 = arith.constant 0 : i32
    %c0_i32_1 = arith.constant 0 : i32
    return %c0_i32, %c0_i32_0 : i32, i32
  }
  func.func @transform_2(%arg0: i32) -> (i32, i32) {
    %c0_i32 = arith.constant 0 : i32
    %c0_i32_0 = arith.constant 0 : i32
    %c0_i32_1 = arith.constant 0 : i32
    return %c0_i32, %c0_i32_0 : i32, i32
  }
  func.func @transform_3(%arg0: i32) -> (i32, i32) {
    %c0_i32 = arith.constant 0 : i32
    %c0_i32_0 = arith.constant 0 : i32
    %c0_i32_1 = arith.constant 0 : i32
    return %c0_i32, %c0_i32_0 : i32, i32
  }
  func.func @transform_4(%arg0: i32) -> (i32, i32) {
    %c0_i32 = arith.constant 0 : i32
    %c0_i32_0 = arith.constant 0 : i32
    %c0_i32_1 = arith.constant 0 : i32
    return %c0_i32, %c0_i32_0 : i32, i32
  }
  func.func @transform_5(%arg0: i32) -> (i32, i32) {
    %c0_i32 = arith.constant 0 : i32
    %c0_i32_0 = arith.constant 0 : i32
    %c0_i32_1 = arith.constant 0 : i32
    return %c0_i32, %c0_i32_0 : i32, i32
  }
  func.func @transform_6(%arg0: i32) -> (i32, i32) {
    %c0_i32 = arith.constant 0 : i32
    %c0_i32_0 = arith.constant 0 : i32
    %c0_i32_1 = arith.constant 0 : i32
    return %c0_i32, %c0_i32_0 : i32, i32
  }
  func.func @transform_7(%arg0: i32) -> (i32, i32) {
    %c0_i32 = arith.constant 0 : i32
    %c0_i32_0 = arith.constant 0 : i32
    return %arg0, %c0_i32 : i32, i32
  }
}

</mosaic_0001>

<llo_original>
// kernel: tpu_custom_call.1
$region0: #{tpu_custom_call.1}
  #allocation0 [shape = 'u32[]', space=smem, size = 0x4, offset = 0x4, fixed_abs, tag = 'smem constant byte address 0x4 - core index']
  #allocation1 [shape = 'u32[144,128]{1,0:T(1,128)}', space=vmem, size = 0x12000, scoped, tag = 'internal scratch']
  %s0 = inlined_call_operand.vmem [shape: f32[8,32], index: 0, kind: input, shape index: {}]
  %s1 = inlined_call_operand.vmem [shape: bf16[32,64], index: 1, kind: input, shape index: {}]
  %s2 = inlined_call_operand.vmem [shape: f32[1,64], index: 2, kind: input, shape index: {}]
  %s3 = inlined_call_operand.vmem [shape: bf16[64,128], index: 3, kind: input, shape index: {}]
  %s4 = inlined_call_operand.vmem [shape: f32[1,128], index: 4, kind: input, shape index: {}]
  %s5 = inlined_call_operand.vmem [shape: bf16[128,16], index: 5, kind: input, shape index: {}]
  %s6 = inlined_call_operand.vmem [shape: f32[1,16], index: 6, kind: input, shape index: {}]
  %s7 = inlined_call_operand.hbm [shape: f32[8,16], index: 7, kind: output, shape index: {}]
  %s8 = sld [smem:[#allocation0]]
  $region38: #{tpu_custom_call.1} parent=0
    _
  %s10 = ssub.s32 1, %s8
  %s11 = scalar_select 0, %s10, %s8
  $region1: #{tpu_custom_call.1} parent=0
    #allocation2 [shape = 'u8[8192]{0}', space=vmem, size = 0x2000, scoped, tag = 'output window, operand 0, single buffered']
    #allocation3 [shape = 's32[1]{0}', space=sflag, size = 0x4, scoped, tag = 'scoped memory for tpu_custom_call.1']
    %12 = vsyncpa [#allocation3], 0
    // Predicated region
    $region2: #{tpu_custom_call.1} parent=1 // pred_check
      _
    $region3: #{tpu_custom_call.1} parent=1 // pred_check_branch
      %14 = sbr.rel (0) target = $region5
    $region4: #{tpu_custom_call.1} parent=1 // pred_region
      _
    $region5: #{tpu_custom_call.1} parent=1 // pred_fallthru
      _
    // Predicated region
    $region6: #{tpu_custom_call.1} parent=1 // pred_check
      _
    $region7: #{tpu_custom_call.1} parent=1 // pred_check_branch
      %16 = sbr.rel (0) target = $region9
    $region8: #{tpu_custom_call.1} parent=1 // pred_region
      _
    $region9: #{tpu_custom_call.1} parent=1 // pred_fallthru
      _
    // Predicated region
    $region10: #{tpu_custom_call.1} parent=1 // pred_check
      _
    $region11: #{tpu_custom_call.1} parent=1 // pred_check_branch
      %18 = sbr.rel (0) target = $region13
    $region12: #{tpu_custom_call.1} parent=1 // pred_region
      _
    $region13: #{tpu_custom_call.1} parent=1 // pred_fallthru
      _
    // Predicated region
    $region14: #{tpu_custom_call.1} parent=1 // pred_check
      _
    $region15: #{tpu_custom_call.1} parent=1 // pred_check_branch
      %20 = sbr.rel (0) target = $region17
    $region16: #{tpu_custom_call.1} parent=1 // pred_region
      _
    $region17: #{tpu_custom_call.1} parent=1 // pred_fallthru
      _
    // Predicated region
    $region18: #{tpu_custom_call.1} parent=1 // pred_check
      _
    $region19: #{tpu_custom_call.1} parent=1 // pred_check_branch
      %22 = sbr.rel (0) target = $region21
    $region20: #{tpu_custom_call.1} parent=1 // pred_region
      _
    $region21: #{tpu_custom_call.1} parent=1 // pred_fallthru
      _
    // Predicated region
    $region22: #{tpu_custom_call.1} parent=1 // pred_check
      _
    $region23: #{tpu_custom_call.1} parent=1 // pred_check_branch
      %24 = sbr.rel (0) target = $region25
    $region24: #{tpu_custom_call.1} parent=1 // pred_region
      _
    $region25: #{tpu_custom_call.1} parent=1 // pred_fallthru
      _
    // Predicated region
    $region26: #{tpu_custom_call.1} parent=1 // pred_check
      _
    $region27: #{tpu_custom_call.1} parent=1 // pred_check_branch
      %26 = sbr.rel (0) target = $region29
    $region28: #{tpu_custom_call.1} parent=1 // pred_region
      _
    $region29: #{tpu_custom_call.1} parent=1 // pred_fallthru
      _
    %v28 = vld [vmem:[%s0] sm:$0xff]
    %v29 = vld [vmem:[%s0 + $0x8] sm:$0xff]
    %v30 = vpack.c.bf16 %v29, %v28
    %v31 = vld [vmem:[%s1] sm:$0xf]
    %v32 = vld [vmem:[%s1 + $0x4] sm:$0xf]
    %v33 = vld [vmem:[%s1 + $0x8] sm:$0xf]
    %v34 = vld [vmem:[%s1 + $0xc] sm:$0xf]
    %v35 = vld [vmem:[%s2] sm:$0x1]
    %v37 = vlaneseq
    %v38 = vshrl.u32 %v37, 7
    %v39 = vsub.s32 0, %v38
    %v40 = vrot.slane %v35, %v39
    %v46 = vunpack.c.l.b16 %v31
    %v47 = vunpack.c.l.b16 %v32
    %v48 = vunpack.c.l.b16 %v33
    %v49 = vunpack.c.l.b16 %v34
    %v50 = vpack.c.b16 %v47, %v46
    %v51 = vpack.c.b16 %v49, %v48
    %vm54 = vcmask 261120
    %v56 = vsel %vm54, %v30, 0
    %58 = vmatprep.subr.bf16.mxu0 0
    %59 = vmatpush1.bf16.msra.mxu0 %v50
    %60 = vmatprep.subr.bf16.mxu0 0
    %61 = vmatpush1.bf16.msra.mxu0 %v51
    %62 = vmatprep.subr.bf16.mxu0 0
    %63 = vmatpush1.bf16.msra.mxu0 0
    %64 = vmatprep.subr.bf16.mxu0 0
    %65 = vmatpush1.bf16.msra.mxu0 0
    %66 = vmatprep.subr.bf16.mxu0 0
    %67 = vmatpush1.bf16.msra.mxu0 0
    %68 = vmatprep.subr.bf16.mxu0 0
    %69 = vmatpush1.bf16.msra.mxu0 0
    %70 = vmatprep.subr.bf16.mxu0 0
    %71 = vmatpush1.bf16.msra.mxu0 0
    %72 = vmatprep.subr.bf16.mxu0 0
    %73 = vmatpush1.bf16.msra.mxu0 0
    %74 = vmatprep.subr.bf16.mxu0 0
    %75 = vmatpush1.bf16.msra.mxu0 0
    %76 = vmatprep.subr.bf16.mxu0 0
    %77 = vmatpush1.bf16.msra.mxu0 0
    %78 = vmatprep.subr.bf16.mxu0 0
    %79 = vmatpush1.bf16.msra.mxu0 0
    %80 = vmatprep.subr.bf16.mxu0 0
    %81 = vmatpush1.bf16.msra.mxu0 0
    %82 = vmatprep.subr.bf16.mxu0 0
    %83 = vmatpush1.bf16.msra.mxu0 0
    %84 = vmatprep.subr.bf16.mxu0 0
    %85 = vmatpush1.bf16.msra.mxu0 0
    %86 = vmatprep.subr.bf16.mxu0 0
    %87 = vmatpush1.bf16.msra.mxu0 0
    %88 = vmatprep.subr.bf16.mxu0 0
    %89 = vmatpush1.bf16.msra.mxu0 0
    %90 = vmatprep.mubr.bf16.mxu0 0
    %91 = vmatmul.mubr.bf16.gmra.mrb[0].mxu0 %v56
    %v92 = vpop.f32.mrb[0].mxu0
    %v93 = vadd.f32 %v40, %v92
    %v94 = vpop.f32.mrb[0].mxu0
    %v95 = vpop.f32.mrb[0].mxu0
    %v96 = vadd.f32 %v40, %v95
    %v97 = vpop.f32.mrb[0].mxu0
    %98 = vdwg.mxu0
    %v99 = vmax.f32 %v93, 0.0
    %v100 = vmax.f32 %v96, 0.0
    %v101 = vpack.c.bf16 %v100, %v99
    %v102 = vld [vmem:[%s3] sm:$0xf]
    %v103 = vld [vmem:[%s3 + $0x4] sm:$0xf]
    %v104 = vld [vmem:[%s3 + $0x8] sm:$0xf]
    %v105 = vld [vmem:[%s3 + $0xc] sm:$0xf]
    %v106 = vld [vmem:[%s3 + $0x10] sm:$0xf]
    %v107 = vld [vmem:[%s3 + $0x14] sm:$0xf]
    %v108 = vld [vmem:[%s3 + $0x18] sm:$0xf]
    %v109 = vld [vmem:[%s3 + $0x1c] sm:$0xf]
    %v110 = vld [vmem:[%s4] sm:$0x1]
    %v112 = vlaneseq
    %v113 = vshrl.u32 %v112, 7
    %v114 = vsub.s32 0, %v113
    %v115 = vrot.slane %v110, %v114
    %v125 = vunpack.c.l.b16 %v102
    %v126 = vunpack.c.l.b16 %v103
    %v127 = vunpack.c.l.b16 %v104
    %v128 = vunpack.c.l.b16 %v105
    %v129 = vunpack.c.l.b16 %v106
    %v130 = vunpack.c.l.b16 %v107
    %v131 = vunpack.c.l.b16 %v108
    %v132 = vunpack.c.l.b16 %v109
    %v133 = vpack.c.b16 %v126, %v125
    %v134 = vpack.c.b16 %v128, %v127
    %v135 = vpack.c.b16 %v130, %v129
    %v136 = vpack.c.b16 %v132, %v131
    %vm141 = vcmask 523264
    %v143 = vsel %vm141, %v101, 0
    %145 = vmatprep.subr.bf16.mxu0 0
    %146 = vmatpush1.bf16.msra.mxu0 %v133
    %147 = vmatprep.subr.bf16.mxu0 0
    %148 = vmatpush1.bf16.msra.mxu0 %v134
    %149 = vmatprep.subr.bf16.mxu0 0
    %150 = vmatpush1.bf16.msra.mxu0 %v135
    %151 = vmatprep.subr.bf16.mxu0 0
    %152 = vmatpush1.bf16.msra.mxu0 %v136
    %153 = vmatprep.subr.bf16.mxu0 0
    %154 = vmatpush1.bf16.msra.mxu0 0
    %155 = vmatprep.subr.bf16.mxu0 0
    %156 = vmatpush1.bf16.msra.mxu0 0
    %157 = vmatprep.subr.bf16.mxu0 0
    %158 = vmatpush1.bf16.msra.mxu0 0
    %159 = vmatprep.subr.bf16.mxu0 0
    %160 = vmatpush1.bf16.msra.mxu0 0
    %161 = vmatprep.subr.bf16.mxu0 0
    %162 = vmatpush1.bf16.msra.mxu0 0
    %163 = vmatprep.subr.bf16.mxu0 0
    %164 = vmatpush1.bf16.msra.mxu0 0
    %165 = vmatprep.subr.bf16.mxu0 0
    %166 = vmatpush1.bf16.msra.mxu0 0
    %167 = vmatprep.subr.bf16.mxu0 0
    %168 = vmatpush1.bf16.msra.mxu0 0
    %169 = vmatprep.subr.bf16.mxu0 0
    %170 = vmatpush1.bf16.msra.mxu0 0
    %171 = vmatprep.subr.bf16.mxu0 0
    %172 = vmatpush1.bf16.msra.mxu0 0
    %173 = vmatprep.subr.bf16.mxu0 0
    %174 = vmatpush1.bf16.msra.mxu0 0
    %175 = vmatprep.subr.bf16.mxu0 0
    %176 = vmatpush1.bf16.msra.mxu0 0
    %177 = vmatprep.mubr.bf16.mxu0 0
    %178 = vmatmul.mubr.bf16.gmra.mrb[0].mxu0 %v143
    %v179 = vpop.f32.mrb[0].mxu0
    %v180 = vadd.f32 %v115, %v179
    %v181 = vpop.f32.mrb[0].mxu0
    %v182 = vpop.f32.mrb[0].mxu0
    %v183 = vadd.f32 %v115, %v182
    %v184 = vpop.f32.mrb[0].mxu0
    %185 = vdwg.mxu0
    %v186 = vmax.f32 %v180, 0.0
    %v187 = vmax.f32 %v183, 0.0
    %v188 = vpack.c.bf16 %v187, %v186
    %v189 = vld [vmem:[%s5] sm:$0xf]
    %v190 = vld [vmem:[%s5 + $0x4] sm:$0xf]
    %v191 = vld [vmem:[%s5 + $0x8] sm:$0xf]
    %v192 = vld [vmem:[%s5 + $0xc] sm:$0xf]
    %v193 = vld [vmem:[%s5 + $0x10] sm:$0xf]
    %v194 = vld [vmem:[%s5 + $0x14] sm:$0xf]
    %v195 = vld [vmem:[%s5 + $0x18] sm:$0xf]
    %v196 = vld [vmem:[%s5 + $0x1c] sm:$0xf]
    %v197 = vld [vmem:[%s5 + $0x20] sm:$0xf]
    %v198 = vld [vmem:[%s5 + $0x24] sm:$0xf]
    %v199 = vld [vmem:[%s5 + $0x28] sm:$0xf]
    %v200 = vld [vmem:[%s5 + $0x2c] sm:$0xf]
    %v201 = vld [vmem:[%s5 + $0x30] sm:$0xf]
    %v202 = vld [vmem:[%s5 + $0x34] sm:$0xf]
    %v203 = vld [vmem:[%s5 + $0x38] sm:$0xf]
    %v204 = vld [vmem:[%s5 + $0x3c] sm:$0xf]
    %v205 = vld [vmem:[%s6] sm:$0x1]
    %v207 = vlaneseq
    %v208 = vshrl.u32 %v207, 7
    %v209 = vsub.s32 0, %v208
    %v210 = vrot.slane %v205, %v209
    %v228 = vunpack.c.l.b16 %v189
    %v229 = vunpack.c.l.b16 %v190
    %v230 = vunpack.c.l.b16 %v191
    %v231 = vunpack.c.l.b16 %v192
    %v232 = vunpack.c.l.b16 %v193
    %v233 = vunpack.c.l.b16 %v194
    %v234 = vunpack.c.l.b16 %v195
    %v235 = vunpack.c.l.b16 %v196
    %v236 = vunpack.c.l.b16 %v197
    %v237 = vunpack.c.l.b16 %v198
    %v238 = vunpack.c.l.b16 %v199
    %v239 = vunpack.c.l.b16 %v200
    %v240 = vunpack.c.l.b16 %v201
    %v241 = vunpack.c.l.b16 %v202
    %v242 = vunpack.c.l.b16 %v203
    %v243 = vunpack.c.l.b16 %v204
    %v244 = vpack.c.b16 %v229, %v228
    %v245 = vpack.c.b16 %v231, %v230
    %v246 = vpack.c.b16 %v233, %v232
    %v247 = vpack.c.b16 %v235, %v234
    %v248 = vpack.c.b16 %v237, %v236
    %v249 = vpack.c.b16 %v239, %v238
    %v250 = vpack.c.b16 %v241, %v240
    %v251 = vpack.c.b16 %v243, %v242
    %260 = vmatprep.subr.bf16.mxu0 0
    %261 = vmatpush1.bf16.msra.mxu0 %v244
    %262 = vmatprep.subr.bf16.mxu0 0
    %263 = vmatpush1.bf16.msra.mxu0 %v245
    %264 = vmatprep.subr.bf16.mxu0 0
    %265 = vmatpush1.bf16.msra.mxu0 %v246
    %266 = vmatprep.subr.bf16.mxu0 0
    %267 = vmatpush1.bf16.msra.mxu0 %v247
    %268 = vmatprep.subr.bf16.mxu0 0
    %269 = vmatpush1.bf16.msra.mxu0 %v248
    %270 = vmatprep.subr.bf16.mxu0 0
    %271 = vmatpush1.bf16.msra.mxu0 %v249
    %272 = vmatprep.subr.bf16.mxu0 0
    %273 = vmatpush1.bf16.msra.mxu0 %v250
    %274 = vmatprep.subr.bf16.mxu0 0
    %275 = vmatpush1.bf16.msra.mxu0 %v251
    %276 = vmatprep.subr.bf16.mxu0 0
    %277 = vmatpush1.bf16.msra.mxu0 0
    %278 = vmatprep.subr.bf16.mxu0 0
    %279 = vmatpush1.bf16.msra.mxu0 0
    %280 = vmatprep.subr.bf16.mxu0 0
    %281 = vmatpush1.bf16.msra.mxu0 0
    %282 = vmatprep.subr.bf16.mxu0 0
    %283 = vmatpush1.bf16.msra.mxu0 0
    %284 = vmatprep.subr.bf16.mxu0 0
    %285 = vmatpush1.bf16.msra.mxu0 0
    %286 = vmatprep.subr.bf16.mxu0 0
    %287 = vmatpush1.bf16.msra.mxu0 0
    %288 = vmatprep.subr.bf16.mxu0 0
    %289 = vmatpush1.bf16.msra.mxu0 0
    %290 = vmatprep.subr.bf16.mxu0 0
    %291 = vmatpush1.bf16.msra.mxu0 0
    %292 = vmatprep.mubr.bf16.mxu0 0
    %293 = vmatmul.mubr.bf16.gmra.mrb[0].mxu0 %v188
    %v294 = vpop.f32.mrb[0].mxu0
    %v295 = vadd.f32 %v210, %v294
    %v296 = vpop.f32.mrb[0].mxu0
    %v297 = vpop.f32.mrb[0].mxu0
    %v298 = vadd.f32 %v210, %v297
    %v299 = vpop.f32.mrb[0].mxu0
    %300 = vdwg.mxu0
    %vm301 = vcmask 130048
    %302 = vst.msk [vmem:[#allocation2] sm:$0xff] %vm301, %v295
    %303 = vst.msk [vmem:[#allocation2 + $0x8] sm:$0xff] %vm301, %v298
    // Predicated region
    $region30: #{tpu_custom_call.1} parent=1 // pred_check
      _
    $region31: #{tpu_custom_call.1} parent=1 // pred_check_branch
      %305 = sbr.rel (0) target = $region33
    $region32: #{tpu_custom_call.1} parent=1 // pred_region
      %s307 = ssub.s32 256, 128
      %308 = vsyncadd [#allocation3], %s307
      %s309 = sshll.u32 [#allocation2], 4
      %s310 = int_to_ptr.vmem [resolvable:$true] %s309
      %315 = dma.vmem_to_hbm [thread:$0]  %s310, 128, %s7, [#allocation3], 128, 128, 8
    $region33: #{tpu_custom_call.1} parent=1 // pred_fallthru
      _
    // Predicated region
    $region34: #{tpu_custom_call.1} parent=1 // pred_check
      _
    $region35: #{tpu_custom_call.1} parent=1 // pred_check_branch
      %317 = sbr.rel (0) target = $region37
    $region36: #{tpu_custom_call.1} parent=1 // pred_region
      %318 = dma.done [#allocation3], 256
    $region37: #{tpu_custom_call.1} parent=1 // pred_fallthru
      _
    %319 = vsyncpa [#allocation3], 1

</llo_original>
